<compile_context>
chip_gen: v7x
topology: tpu7x:2x2x1
jax: 0.10.0
libtpu: 0.0.40
codegen_flags: <defaults>
</compile_context>

<pallas_src>
import jax
import jax.numpy as jnp
from jax.experimental import pallas as pl
from jax.experimental.pallas import tpu as pltpu


# ----------------------------- kernel ---------------------------------------


def predictor_kernel(
    x_ref,
    w1_ref, b1_ref,
    w2_ref, b2_ref,
    w3_ref, b3_ref,
    w4_ref, b4_ref,
    o_ref,
):
    """Fused 4-layer MLP: (Linear+BN folded -> ReLU) x3 -> Linear.

    One grid step processes a (batch_tile, D_pad) tile of the batch; the
    pre-folded / pre-transposed / pre-padded weights are full VMEM blocks with
    a constant block index, so they stay resident across grid steps.
    """
    compute_dtype = w1_ref.dtype            # f32 or bf16 (wrapper's choice)
    h = x_ref[...].astype(compute_dtype)

    def hidden(h, w_ref, b_ref):
        # MXU matmul with f32 accumulation; bias (BN already folded in) and
        # ReLU run on the f32 accumulator.
        y = jnp.dot(h, w_ref[...], preferred_element_type=jnp.float32)
        y = y + b_ref[...]                  # (1, D_pad) row broadcast
        y = jnp.maximum(y, 0.0)             # ReLU
        return y.astype(compute_dtype)

    h = hidden(h, w1_ref, b1_ref)
    h = hidden(h, w2_ref, b2_ref)
    h = hidden(h, w3_ref, b3_ref)

    # TODO(synk): nn.Dropout(0.3) is identity in eval mode; training-mode
    # stochastic dropout masks are not reproduced here.
    out = jnp.dot(h, w4_ref[...], preferred_element_type=jnp.float32)
    out = out + b4_ref[...]
    o_ref[...] = out.astype(o_ref.dtype)


# ----------------------------- wrapper ---------------------------------------


def _round_up(x, m):
    return ((x + m - 1) // m) * m


def _pad_2d(a, rows, cols):
    out = jnp.zeros((rows, cols), a.dtype)
    return out.at[: a.shape[0], : a.shape[1]].set(a)


def _pad_row(v, cols):
    out = jnp.zeros((1, cols), v.dtype)
    return out.at[0, : v.shape[0]].set(v)


def predictor_forward(x, params, *, param_dtype=jnp.float32, eps=1e-5):
    """Eval-mode Predictor forward.

    x: (B, D) float32. params: dict of per-layer tensors (see init_params).
    param_dtype: dtype for the folded weight matrices and activations inside
    the kernel (use jnp.bfloat16 on v6e/v7x for full-rate MXU and halved
    weight/activation traffic; accumulation stays f32 either way).
    """
    B, D = x.shape
    out_dtype = x.dtype

    # Lane-dense feature dim (multiple of 128); sublane-aligned batch tiles.
    D_pad = _round_up(max(D, 128), 128)
    B_pad = _round_up(max(B, 8), 8)
    if B_pad <= 512:
        batch_tile = B_pad                  # single block, no grid-loop overhead
    else:
        batch_tile = 512
        B_pad = _round_up(B_pad, batch_tile)
    grid = B_pad // batch_tile

    # Cast the activations wrapper-side so the per-step x DMA is already narrow.
    x_p = _pad_2d(x, B_pad, D_pad).astype(param_dtype)

    # Fold eval-mode BatchNorm1d and the Linear bias into each hidden layer:
    #   scale = gamma / sqrt(var + eps), shift = beta - mean * scale
    #   y = (x @ W^T + b) * scale + shift = x @ (W^T * scale) + (b*scale + shift)
    flat_args = []
    for l in (1, 2, 3):
        w_t = params[f"w{l}"].T                                   # (D_in, D_out)
        scale = params[f"gamma{l}"] / jnp.sqrt(params[f"var{l}"] + eps)
        shift = params[f"beta{l}"] - params[f"mean{l}"] * scale
        w_f = w_t * scale[None, :]
        b_f = params[f"b{l}"] * scale + shift
        flat_args.append(_pad_2d(w_f, D_pad, D_pad).astype(param_dtype))
        flat_args.append(_pad_row(b_f.astype(jnp.float32), D_pad))
    flat_args.append(_pad_2d(params["w4"].T, D_pad, D_pad).astype(param_dtype))
    flat_args.append(_pad_row(params["b4"].astype(jnp.float32), D_pad))

    x_spec = pl.BlockSpec((batch_tile, D_pad), lambda i: (i, 0))
    const_block = lambda shape: pl.BlockSpec(shape, lambda i: (0, 0))
    in_specs = [x_spec]
    for _ in range(4):
        in_specs += [const_block((D_pad, D_pad)), const_block((1, D_pad))]

    # Scoped-VMEM budget: weights (double-buffered by default) + biases +
    # x/out tiles + f32 working activations.  Only raise the limit when the
    # footprint exceeds the conservative 16 MiB default; cap well under the
    # 64 MiB physical VMEM of a v7x TensorCore.
    p_bytes = jnp.dtype(param_dtype).itemsize
    need = (
        4 * D_pad * D_pad * p_bytes * 2            # weights (x2 buffers)
        + 4 * 8 * D_pad * 4 * 2                    # biases (sublane-padded)
        + batch_tile * D_pad * p_bytes * 2         # x tile
        + batch_tile * D_pad * jnp.dtype(out_dtype).itemsize * 2  # out tile
        + batch_tile * D_pad * 4 * 3               # f32 working activations
        + (2 << 20)                                # headroom
    )
    vmem_limit = int(min(need, 56 << 20)) if need > (16 << 20) else None

    out_pad = pl.pallas_call(
        predictor_kernel,
        out_shape=jax.ShapeDtypeStruct((B_pad, D_pad), out_dtype),
        grid_spec=pltpu.PrefetchScalarGridSpec(
            num_scalar_prefetch=0,
            grid=(grid,),
            in_specs=in_specs,
            out_specs=pl.BlockSpec((batch_tile, D_pad), lambda i: (i, 0)),
        ),
        compiler_params=pltpu.CompilerParams(
            # Megacore sharding only pays when there are enough grid steps;
            # for tiny grids it just duplicates weights into both cores' VMEM.
            dimension_semantics=("parallel",) if grid >= 4 else ("arbitrary",),
            vmem_limit_bytes=vmem_limit,
        ),
    )(x_p, *flat_args)

    return out_pad[:B, :D]


# ----------------------------- test harness ----------------------------------


def init_params(key, dim):
    """Deterministic synthetic parameters matching Predictor(indim=dim, layer=4)."""
    params = {}
    keys = jax.random.split(key, 16)
    ki = iter(range(16))
    bound = 1.0 / jnp.sqrt(dim)
    for l in (1, 2, 3, 4):
        params[f"w{l}"] = jax.random.uniform(
            keys[next(ki)], (dim, dim), jnp.float32, -bound, bound)
        params[f"b{l}"] = jax.random.uniform(
            keys[next(ki)], (dim,), jnp.float32, -bound, bound)
    for l in (1, 2, 3):
        params[f"gamma{l}"] = 1.0 + 0.1 * jax.random.normal(
            keys[next(ki)], (dim,), jnp.float32)
        params[f"beta{l}"] = 0.1 * jax.random.normal(
            keys[next(ki)], (dim,), jnp.float32)
        params[f"mean{l}"] = 0.05 * jnp.arange(dim, dtype=jnp.float32)
        params[f"var{l}"] = 1.0 + 0.01 * jnp.arange(dim, dtype=jnp.float32)
    return params


def predictor_reference(x, params):
    """Pure-JAX reference of the eval-mode forward pass."""
    eps = 1e-5
    h = x
    for l in (1, 2, 3):
        h = h @ params[f"w{l}"].T + params[f"b{l}"]
        h = (h - params[f"mean{l}"]) / jnp.sqrt(params[f"var{l}"] + eps)
        h = h * params[f"gamma{l}"] + params[f"beta{l}"]
        h = jnp.maximum(h, 0.0)
    return h @ params["w4"].T + params["b4"]


if __name__ == "__main__":
    key = jax.random.PRNGKey(0)
    k_x, k_p = jax.random.split(key)

    B, D = 16, 32  # batch, indim (= meddim = outdim in the default config)
    x = jax.random.normal(k_x, (B, D), jnp.float32)
    params = init_params(k_p, D)
    ref = predictor_reference(x, params)

    fwd = jax.jit(predictor_forward, static_argnames=("param_dtype",))

    # f32 weights: strict correctness check.
    out = jax.block_until_ready(fwd(x, params, param_dtype=jnp.float32))
    assert out.shape == (B, D)
    assert jnp.allclose(out, ref, atol=1e-4, rtol=1e-4), "f32 mismatch vs reference"

    # bf16 weights/activations (v6e/v7x fast path): loose tolerance check.
    out_bf16 = jax.block_until_ready(fwd(x, params, param_dtype=jnp.bfloat16))
    assert out_bf16.shape == (B, D)
    assert jnp.allclose(out_bf16, ref, atol=1e-1, rtol=1e-1), "bf16 mismatch vs reference"

    print("KERNEL_OK")
</pallas_src>

<mosaic_0001>
module attributes {stable_mosaic.version = 11 : i64} {
  func.func @predictor_kernel(%arg0: i32, %arg1: memref<16x128xf32, #tpu.memory_space<vmem>>, %arg2: memref<128x128xf32, #tpu.memory_space<vmem>>, %arg3: memref<1x128xf32, #tpu.memory_space<vmem>>, %arg4: memref<128x128xf32, #tpu.memory_space<vmem>>, %arg5: memref<1x128xf32, #tpu.memory_space<vmem>>, %arg6: memref<128x128xf32, #tpu.memory_space<vmem>>, %arg7: memref<1x128xf32, #tpu.memory_space<vmem>>, %arg8: memref<128x128xf32, #tpu.memory_space<vmem>>, %arg9: memref<1x128xf32, #tpu.memory_space<vmem>>, %arg10: memref<16x128xf32, #tpu.memory_space<vmem>>) attributes {dimension_semantics = [#tpu.dimension_semantics<arbitrary>], iteration_bounds = array<i64: 1>, scalar_prefetch = 0 : i64, scratch_operands = 0 : i64, tpu.core_type = #tpu.core_type<tc>, window_params = [{transform_indices = @transform_0, window_bounds = array<i64: 16, 128>}, {pipeline_mode = #tpu.pipeline_mode<synchronous>, transform_indices = @transform_1, window_bounds = array<i64: 128, 128>}, {pipeline_mode = #tpu.pipeline_mode<synchronous>, transform_indices = @transform_2, window_bounds = array<i64: 1, 128>}, {pipeline_mode = #tpu.pipeline_mode<synchronous>, transform_indices = @transform_3, window_bounds = array<i64: 128, 128>}, {pipeline_mode = #tpu.pipeline_mode<synchronous>, transform_indices = @transform_4, window_bounds = array<i64: 1, 128>}, {pipeline_mode = #tpu.pipeline_mode<synchronous>, transform_indices = @transform_5, window_bounds = array<i64: 128, 128>}, {pipeline_mode = #tpu.pipeline_mode<synchronous>, transform_indices = @transform_6, window_bounds = array<i64: 1, 128>}, {pipeline_mode = #tpu.pipeline_mode<synchronous>, transform_indices = @transform_7, window_bounds = array<i64: 128, 128>}, {pipeline_mode = #tpu.pipeline_mode<synchronous>, transform_indices = @transform_8, window_bounds = array<i64: 1, 128>}, {transform_indices = @transform_9, window_bounds = array<i64: 16, 128>}]} {
    %c0 = arith.constant 0 : index
    %c0_0 = arith.constant 0 : index
    %0 = vector.load %arg1[%c0, %c0_0] : memref<16x128xf32, #tpu.memory_space<vmem>>, vector<16x128xf32>
    %c0_1 = arith.constant 0 : index
    %c0_2 = arith.constant 0 : index
    %1 = vector.load %arg2[%c0_1, %c0_2] : memref<128x128xf32, #tpu.memory_space<vmem>>, vector<128x128xf32>
    %cst = arith.constant dense<0.000000e+00> : vector<16x128xf32>
    %2 = tpu.matmul %0, %1, %cst {dimension_numbers = #tpu.dot_dimension_numbers<[1], [0], [0], [1], [0, 0, 1, 1], [], []>} : vector<16x128xf32>, vector<128x128xf32>, vector<16x128xf32> -> vector<16x128xf32>
    %c0_3 = arith.constant 0 : index
    %c0_4 = arith.constant 0 : index
    %3 = vector.load %arg3[%c0_3, %c0_4] : memref<1x128xf32, #tpu.memory_space<vmem>>, vector<1x128xf32>
    %4 = vector.broadcast %3 : vector<1x128xf32> to vector<16x128xf32>
    %5 = arith.addf %2, %4 : vector<16x128xf32>
    %cst_5 = arith.constant 0.000000e+00 : f32
    %6 = vector.broadcast %cst_5 : f32 to vector<16x128xf32>
    %7 = arith.maximumf %5, %6 : vector<16x128xf32>
    %c0_6 = arith.constant 0 : index
    %c0_7 = arith.constant 0 : index
    %8 = vector.load %arg4[%c0_6, %c0_7] : memref<128x128xf32, #tpu.memory_space<vmem>>, vector<128x128xf32>
    %cst_8 = arith.constant dense<0.000000e+00> : vector<16x128xf32>
    %9 = tpu.matmul %7, %8, %cst_8 {dimension_numbers = #tpu.dot_dimension_numbers<[1], [0], [0], [1], [0, 0, 1, 1], [], []>} : vector<16x128xf32>, vector<128x128xf32>, vector<16x128xf32> -> vector<16x128xf32>
    %c0_9 = arith.constant 0 : index
    %c0_10 = arith.constant 0 : index
    %10 = vector.load %arg5[%c0_9, %c0_10] : memref<1x128xf32, #tpu.memory_space<vmem>>, vector<1x128xf32>
    %11 = vector.broadcast %10 : vector<1x128xf32> to vector<16x128xf32>
    %12 = arith.addf %9, %11 : vector<16x128xf32>
    %cst_11 = arith.constant 0.000000e+00 : f32
    %13 = vector.broadcast %cst_11 : f32 to vector<16x128xf32>
    %14 = arith.maximumf %12, %13 : vector<16x128xf32>
    %c0_12 = arith.constant 0 : index
    %c0_13 = arith.constant 0 : index
    %15 = vector.load %arg6[%c0_12, %c0_13] : memref<128x128xf32, #tpu.memory_space<vmem>>, vector<128x128xf32>
    %cst_14 = arith.constant dense<0.000000e+00> : vector<16x128xf32>
    %16 = tpu.matmul %14, %15, %cst_14 {dimension_numbers = #tpu.dot_dimension_numbers<[1], [0], [0], [1], [0, 0, 1, 1], [], []>} : vector<16x128xf32>, vector<128x128xf32>, vector<16x128xf32> -> vector<16x128xf32>
    %c0_15 = arith.constant 0 : index
    %c0_16 = arith.constant 0 : index
    %17 = vector.load %arg7[%c0_15, %c0_16] : memref<1x128xf32, #tpu.memory_space<vmem>>, vector<1x128xf32>
    %18 = vector.broadcast %17 : vector<1x128xf32> to vector<16x128xf32>
    %19 = arith.addf %16, %18 : vector<16x128xf32>
    %cst_17 = arith.constant 0.000000e+00 : f32
    %20 = vector.broadcast %cst_17 : f32 to vector<16x128xf32>
    %21 = arith.maximumf %19, %20 : vector<16x128xf32>
    %c0_18 = arith.constant 0 : index
    %c0_19 = arith.constant 0 : index
    %22 = vector.load %arg8[%c0_18, %c0_19] : memref<128x128xf32, #tpu.memory_space<vmem>>, vector<128x128xf32>
    %cst_20 = arith.constant dense<0.000000e+00> : vector<16x128xf32>
    %23 = tpu.matmul %21, %22, %cst_20 {dimension_numbers = #tpu.dot_dimension_numbers<[1], [0], [0], [1], [0, 0, 1, 1], [], []>} : vector<16x128xf32>, vector<128x128xf32>, vector<16x128xf32> -> vector<16x128xf32>
    %c0_21 = arith.constant 0 : index
    %c0_22 = arith.constant 0 : index
    %24 = vector.load %arg9[%c0_21, %c0_22] : memref<1x128xf32, #tpu.memory_space<vmem>>, vector<1x128xf32>
    %25 = vector.broadcast %24 : vector<1x128xf32> to vector<16x128xf32>
    %26 = arith.addf %23, %25 : vector<16x128xf32>
    %c0_23 = arith.constant 0 : index
    %c0_24 = arith.constant 0 : index
    %27 = vector.load %arg10[%c0_23, %c0_24] : memref<16x128xf32, #tpu.memory_space<vmem>>, vector<16x128xf32>
    tpu.vector_store %arg10[%c0_23, %c0_24], %26 {strides = array<i32>} : memref<16x128xf32, #tpu.memory_space<vmem>>, vector<16x128xf32>,
    return
  }
  func.func @transform_0(%arg0: i32) -> (i32, i32) {
    %c0_i32 = arith.constant 0 : i32
    %c0_i32_0 = arith.constant 0 : i32
    return %arg0, %c0_i32 : i32, i32
  }
  func.func @transform_1(%arg0: i32) -> (i32, i32) {
    %c0_i32 = arith.constant 0 : i32
    %c0_i32_0 = arith.constant 0 : i32
    %c0_i32_1 = arith.constant 0 : i32
    return %c0_i32, %c0_i32_0 : i32, i32
  }
  func.func @transform_2(%arg0: i32) -> (i32, i32) {
    %c0_i32 = arith.constant 0 : i32
    %c0_i32_0 = arith.constant 0 : i32
    %c0_i32_1 = arith.constant 0 : i32
    return %c0_i32, %c0_i32_0 : i32, i32
  }
  func.func @transform_3(%arg0: i32) -> (i32, i32) {
    %c0_i32 = arith.constant 0 : i32
    %c0_i32_0 = arith.constant 0 : i32
    %c0_i32_1 = arith.constant 0 : i32
    return %c0_i32, %c0_i32_0 : i32, i32
  }
  func.func @transform_4(%arg0: i32) -> (i32, i32) {
    %c0_i32 = arith.constant 0 : i32
    %c0_i32_0 = arith.constant 0 : i32
    %c0_i32_1 = arith.constant 0 : i32
    return %c0_i32, %c0_i32_0 : i32, i32
  }
  func.func @transform_5(%arg0: i32) -> (i32, i32) {
    %c0_i32 = arith.constant 0 : i32
    %c0_i32_0 = arith.constant 0 : i32
    %c0_i32_1 = arith.constant 0 : i32
    return %c0_i32, %c0_i32_0 : i32, i32
  }
  func.func @transform_6(%arg0: i32) -> (i32, i32) {
    %c0_i32 = arith.constant 0 : i32
    %c0_i32_0 = arith.constant 0 : i32
    %c0_i32_1 = arith.constant 0 : i32
    return %c0_i32, %c0_i32_0 : i32, i32
  }
  func.func @transform_7(%arg0: i32) -> (i32, i32) {
    %c0_i32 = arith.constant 0 : i32
    %c0_i32_0 = arith.constant 0 : i32
    %c0_i32_1 = arith.constant 0 : i32
    return %c0_i32, %c0_i32_0 : i32, i32
  }
  func.func @transform_8(%arg0: i32) -> (i32, i32) {
    %c0_i32 = arith.constant 0 : i32
    %c0_i32_0 = arith.constant 0 : i32
    %c0_i32_1 = arith.constant 0 : i32
    return %c0_i32, %c0_i32_0 : i32, i32
  }
  func.func @transform_9(%arg0: i32) -> (i32, i32) {
    %c0_i32 = arith.constant 0 : i32
    %c0_i32_0 = arith.constant 0 : i32
    return %arg0, %c0_i32 : i32, i32
  }
}

</mosaic_0001>

<llo_original>
// kernel: predictor_forward.1
$region0: #{predictor_forward.1}
  #allocation0 [shape = 'u32[]', space=smem, size = 0x4, offset = 0x4, fixed_abs, tag = 'smem constant byte address 0x4 - core index']
  #allocation1 [shape = 'u32[144,128]{1,0:T(1,128)}', space=vmem, size = 0x12000, scoped, tag = 'internal scratch']
  %s0 = inlined_call_operand.vmem [shape: f32[16,128], index: 0, kind: input, shape index: {}]
  %s1 = inlined_call_operand.vmem [shape: f32[128,128], index: 1, kind: input, shape index: {}]
  %s2 = inlined_call_operand.vmem [shape: f32[1,128], index: 2, kind: input, shape index: {}]
  %s3 = inlined_call_operand.vmem [shape: f32[128,128], index: 3, kind: input, shape index: {}]
  %s4 = inlined_call_operand.vmem [shape: f32[1,128], index: 4, kind: input, shape index: {}]
  %s5 = inlined_call_operand.vmem [shape: f32[128,128], index: 5, kind: input, shape index: {}]
  %s6 = inlined_call_operand.vmem [shape: f32[1,128], index: 6, kind: input, shape index: {}]
  %s7 = inlined_call_operand.vmem [shape: f32[128,128], index: 7, kind: input, shape index: {}]
  %s8 = inlined_call_operand.vmem [shape: f32[1,128], index: 8, kind: input, shape index: {}]
  %s9 = inlined_call_operand.hbm [shape: f32[16,128], index: 9, kind: output, shape index: {}]
  %s10 = sld [smem:[#allocation0]]
  $region46: #{predictor_forward.1} parent=0
    _
  %s12 = ssub.s32 1, %s10
  %s13 = scalar_select 0, %s12, %s10
  $region1: #{predictor_forward.1} parent=0
    #allocation2 [shape = 'u8[8192]{0}', space=vmem, size = 0x2000, scoped, tag = 'output window, operand 0, single buffered']
    #allocation3 [shape = 's32[1]{0}', space=sflag, size = 0x4, scoped, tag = 'scoped memory for predictor_forward.1']
    %14 = vsyncpa [#allocation3], 0
    // Predicated region
    $region2: #{predictor_forward.1} parent=1 // pred_check
      _
    $region3: #{predictor_forward.1} parent=1 // pred_check_branch
      %16 = sbr.rel (0) target = $region5
    $region4: #{predictor_forward.1} parent=1 // pred_region
      _
    $region5: #{predictor_forward.1} parent=1 // pred_fallthru
      _
    // Predicated region
    $region6: #{predictor_forward.1} parent=1 // pred_check
      _
    $region7: #{predictor_forward.1} parent=1 // pred_check_branch
      %18 = sbr.rel (0) target = $region9
    $region8: #{predictor_forward.1} parent=1 // pred_region
      _
    $region9: #{predictor_forward.1} parent=1 // pred_fallthru
      _
    // Predicated region
    $region10: #{predictor_forward.1} parent=1 // pred_check
      _
    $region11: #{predictor_forward.1} parent=1 // pred_check_branch
      %20 = sbr.rel (0) target = $region13
    $region12: #{predictor_forward.1} parent=1 // pred_region
      _
    $region13: #{predictor_forward.1} parent=1 // pred_fallthru
      _
    // Predicated region
    $region14: #{predictor_forward.1} parent=1 // pred_check
      _
    $region15: #{predictor_forward.1} parent=1 // pred_check_branch
      %22 = sbr.rel (0) target = $region17
    $region16: #{predictor_forward.1} parent=1 // pred_region
      _
    $region17: #{predictor_forward.1} parent=1 // pred_fallthru
      _
    // Predicated region
    $region18: #{predictor_forward.1} parent=1 // pred_check
      _
    $region19: #{predictor_forward.1} parent=1 // pred_check_branch
      %24 = sbr.rel (0) target = $region21
    $region20: #{predictor_forward.1} parent=1 // pred_region
      _
    $region21: #{predictor_forward.1} parent=1 // pred_fallthru
      _
    // Predicated region
    $region22: #{predictor_forward.1} parent=1 // pred_check
      _
    $region23: #{predictor_forward.1} parent=1 // pred_check_branch
      %26 = sbr.rel (0) target = $region25
    $region24: #{predictor_forward.1} parent=1 // pred_region
      _
    $region25: #{predictor_forward.1} parent=1 // pred_fallthru
      _
    // Predicated region
    $region26: #{predictor_forward.1} parent=1 // pred_check
      _
    $region27: #{predictor_forward.1} parent=1 // pred_check_branch
      %28 = sbr.rel (0) target = $region29
    $region28: #{predictor_forward.1} parent=1 // pred_region
      _
    $region29: #{predictor_forward.1} parent=1 // pred_fallthru
      _
    // Predicated region
    $region30: #{predictor_forward.1} parent=1 // pred_check
      _
    $region31: #{predictor_forward.1} parent=1 // pred_check_branch
      %30 = sbr.rel (0) target = $region33
    $region32: #{predictor_forward.1} parent=1 // pred_region
      _
    $region33: #{predictor_forward.1} parent=1 // pred_fallthru
      _
    // Predicated region
    $region34: #{predictor_forward.1} parent=1 // pred_check
      _
    $region35: #{predictor_forward.1} parent=1 // pred_check_branch
      %32 = sbr.rel (0) target = $region37
    $region36: #{predictor_forward.1} parent=1 // pred_region
      _
    $region37: #{predictor_forward.1} parent=1 // pred_fallthru
      _
    %v33 = vld [vmem:[%s0] sm:$0xff]
    %v34 = vld [vmem:[%s0 + $0x8] sm:$0xff]
    %v35 = vld [vmem:[%s1] sm:$0xff]
    %v36 = vld [vmem:[%s1 + $0x8] sm:$0xff]
    %v37 = vld [vmem:[%s1 + $0x10] sm:$0xff]
    %v38 = vld [vmem:[%s1 + $0x18] sm:$0xff]
    %v39 = vld [vmem:[%s1 + $0x20] sm:$0xff]
    %v40 = vld [vmem:[%s1 + $0x28] sm:$0xff]
    %v41 = vld [vmem:[%s1 + $0x30] sm:$0xff]
    %v42 = vld [vmem:[%s1 + $0x38] sm:$0xff]
    %v43 = vld [vmem:[%s1 + $0x40] sm:$0xff]
    %v44 = vld [vmem:[%s1 + $0x48] sm:$0xff]
    %v45 = vld [vmem:[%s1 + $0x50] sm:$0xff]
    %v46 = vld [vmem:[%s1 + $0x58] sm:$0xff]
    %v47 = vld [vmem:[%s1 + $0x60] sm:$0xff]
    %v48 = vld [vmem:[%s1 + $0x68] sm:$0xff]
    %v49 = vld [vmem:[%s1 + $0x70] sm:$0xff]
    %v50 = vld [vmem:[%s1 + $0x78] sm:$0xff]
    %v51 = vld [vmem:[%s2] sm:$0x1]
    %v53 = vlaneseq
    %v54 = vshrl.u32 %v53, 7
    %v55 = vsub.s32 0, %v54
    %v56 = vrot.slane %v51, %v55
    %58 = vmatprep.subr.mxu0 0.0
    %59 = vmatpush1.msra.mxu0 %v35
    %60 = vmatprep.subr.mxu0 0.0
    %61 = vmatpush1.msra.mxu0 %v36
    %62 = vmatprep.subr.mxu0 0.0
    %63 = vmatpush1.msra.mxu0 %v37
    %64 = vmatprep.subr.mxu0 0.0
    %65 = vmatpush1.msra.mxu0 %v38
    %66 = vmatprep.subr.mxu0 0.0
    %67 = vmatpush1.msra.mxu0 %v39
    %68 = vmatprep.subr.mxu0 0.0
    %69 = vmatpush1.msra.mxu0 %v40
    %70 = vmatprep.subr.mxu0 0.0
    %71 = vmatpush1.msra.mxu0 %v41
    %72 = vmatprep.subr.mxu0 0.0
    %73 = vmatpush1.msra.mxu0 %v42
    %74 = vmatprep.subr.mxu0 0.0
    %75 = vmatpush1.msra.mxu0 %v43
    %76 = vmatprep.subr.mxu0 0.0
    %77 = vmatpush1.msra.mxu0 %v44
    %78 = vmatprep.subr.mxu0 0.0
    %79 = vmatpush1.msra.mxu0 %v45
    %80 = vmatprep.subr.mxu0 0.0
    %81 = vmatpush1.msra.mxu0 %v46
    %82 = vmatprep.subr.mxu0 0.0
    %83 = vmatpush1.msra.mxu0 %v47
    %84 = vmatprep.subr.mxu0 0.0
    %85 = vmatpush1.msra.mxu0 %v48
    %86 = vmatprep.subr.mxu0 0.0
    %87 = vmatpush1.msra.mxu0 %v49
    %88 = vmatprep.subr.mxu0 0.0
    %89 = vmatpush1.msra.mxu0 %v50
    %90 = vmatprep.subr.mxu0 0.0
    %91 = vmatpush1.msra.mxu0 0.0
    %92 = vmatprep.subr.mxu0 0.0
    %93 = vmatpush1.msra.mxu0 0.0
    %94 = vmatprep.subr.mxu0 0.0
    %95 = vmatpush1.msra.mxu0 0.0
    %96 = vmatprep.subr.mxu0 0.0
    %97 = vmatpush1.msra.mxu0 0.0
    %98 = vmatprep.subr.mxu0 0.0
    %99 = vmatpush1.msra.mxu0 0.0
    %100 = vmatprep.subr.mxu0 0.0
    %101 = vmatpush1.msra.mxu0 0.0
    %102 = vmatprep.subr.mxu0 0.0
    %103 = vmatpush1.msra.mxu0 0.0
    %104 = vmatprep.subr.mxu0 0.0
    %105 = vmatpush1.msra.mxu0 0.0
    %106 = vmatprep.subr.mxu0 0.0
    %107 = vmatpush1.msra.mxu0 0.0
    %108 = vmatprep.subr.mxu0 0.0
    %109 = vmatpush1.msra.mxu0 0.0
    %110 = vmatprep.subr.mxu0 0.0
    %111 = vmatpush1.msra.mxu0 0.0
    %112 = vmatprep.subr.mxu0 0.0
    %113 = vmatpush1.msra.mxu0 0.0
    %114 = vmatprep.subr.mxu0 0.0
    %115 = vmatpush1.msra.mxu0 0.0
    %116 = vmatprep.subr.mxu0 0.0
    %117 = vmatpush1.msra.mxu0 0.0
    %118 = vmatprep.subr.mxu0 0.0
    %119 = vmatpush1.msra.mxu0 0.0
    %120 = vmatprep.subr.mxu0 0.0
    %121 = vmatpush1.msra.mxu0 0.0
    %122 = vmatprep.mubr.f32.mxu0 0.0
    %123 = vmatmul.mubr.f32.gmra.mrb[0].mxu0 %v33
    %v124 = vpop.f32.mrb[0].mxu0
    %v125 = vadd.f32 %v56, %v124
    %v126 = vpop.f32.mrb[0].mxu0
    %127 = vmatprep.mubr.f32.mxu0 0.0
    %128 = vmatmul.mubr.f32.gmra.mrb[0].mxu0 %v34
    %v129 = vpop.f32.mrb[0].mxu0
    %v130 = vadd.f32 %v56, %v129
    %v131 = vpop.f32.mrb[0].mxu0
    %132 = vdwg.mxu0
    %v133 = vmax.f32 %v125, 0.0
    %v134 = vmax.f32 %v130, 0.0
    %v135 = vld [vmem:[%s3] sm:$0xff]
    %v136 = vld [vmem:[%s3 + $0x8] sm:$0xff]
    %v137 = vld [vmem:[%s3 + $0x10] sm:$0xff]
    %v138 = vld [vmem:[%s3 + $0x18] sm:$0xff]
    %v139 = vld [vmem:[%s3 + $0x20] sm:$0xff]
    %v140 = vld [vmem:[%s3 + $0x28] sm:$0xff]
    %v141 = vld [vmem:[%s3 + $0x30] sm:$0xff]
    %v142 = vld [vmem:[%s3 + $0x38] sm:$0xff]
    %v143 = vld [vmem:[%s3 + $0x40] sm:$0xff]
    %v144 = vld [vmem:[%s3 + $0x48] sm:$0xff]
    %v145 = vld [vmem:[%s3 + $0x50] sm:$0xff]
    %v146 = vld [vmem:[%s3 + $0x58] sm:$0xff]
    %v147 = vld [vmem:[%s3 + $0x60] sm:$0xff]
    %v148 = vld [vmem:[%s3 + $0x68] sm:$0xff]
    %v149 = vld [vmem:[%s3 + $0x70] sm:$0xff]
    %v150 = vld [vmem:[%s3 + $0x78] sm:$0xff]
    %v151 = vld [vmem:[%s4] sm:$0x1]
    %v153 = vlaneseq
    %v154 = vshrl.u32 %v153, 7
    %v155 = vsub.s32 0, %v154
    %v156 = vrot.slane %v151, %v155
    %158 = vmatprep.subr.mxu0 0.0
    %159 = vmatpush1.msra.mxu0 %v135
    %160 = vmatprep.subr.mxu0 0.0
    %161 = vmatpush1.msra.mxu0 %v136
    %162 = vmatprep.subr.mxu0 0.0
    %163 = vmatpush1.msra.mxu0 %v137
    %164 = vmatprep.subr.mxu0 0.0
    %165 = vmatpush1.msra.mxu0 %v138
    %166 = vmatprep.subr.mxu0 0.0
    %167 = vmatpush1.msra.mxu0 %v139
    %168 = vmatprep.subr.mxu0 0.0
    %169 = vmatpush1.msra.mxu0 %v140
    %170 = vmatprep.subr.mxu0 0.0
    %171 = vmatpush1.msra.mxu0 %v141
    %172 = vmatprep.subr.mxu0 0.0
    %173 = vmatpush1.msra.mxu0 %v142
    %174 = vmatprep.subr.mxu0 0.0
    %175 = vmatpush1.msra.mxu0 %v143
    %176 = vmatprep.subr.mxu0 0.0
    %177 = vmatpush1.msra.mxu0 %v144
    %178 = vmatprep.subr.mxu0 0.0
    %179 = vmatpush1.msra.mxu0 %v145
    %180 = vmatprep.subr.mxu0 0.0
    %181 = vmatpush1.msra.mxu0 %v146
    %182 = vmatprep.subr.mxu0 0.0
    %183 = vmatpush1.msra.mxu0 %v147
    %184 = vmatprep.subr.mxu0 0.0
    %185 = vmatpush1.msra.mxu0 %v148
    %186 = vmatprep.subr.mxu0 0.0
    %187 = vmatpush1.msra.mxu0 %v149
    %188 = vmatprep.subr.mxu0 0.0
    %189 = vmatpush1.msra.mxu0 %v150
    %190 = vmatprep.subr.mxu0 0.0
    %191 = vmatpush1.msra.mxu0 0.0
    %192 = vmatprep.subr.mxu0 0.0
    %193 = vmatpush1.msra.mxu0 0.0
    %194 = vmatprep.subr.mxu0 0.0
    %195 = vmatpush1.msra.mxu0 0.0
    %196 = vmatprep.subr.mxu0 0.0
    %197 = vmatpush1.msra.mxu0 0.0
    %198 = vmatprep.subr.mxu0 0.0
    %199 = vmatpush1.msra.mxu0 0.0
    %200 = vmatprep.subr.mxu0 0.0
    %201 = vmatpush1.msra.mxu0 0.0
    %202 = vmatprep.subr.mxu0 0.0
    %203 = vmatpush1.msra.mxu0 0.0
    %204 = vmatprep.subr.mxu0 0.0
    %205 = vmatpush1.msra.mxu0 0.0
    %206 = vmatprep.subr.mxu0 0.0
    %207 = vmatpush1.msra.mxu0 0.0
    %208 = vmatprep.subr.mxu0 0.0
    %209 = vmatpush1.msra.mxu0 0.0
    %210 = vmatprep.subr.mxu0 0.0
    %211 = vmatpush1.msra.mxu0 0.0
    %212 = vmatprep.subr.mxu0 0.0
    %213 = vmatpush1.msra.mxu0 0.0
    %214 = vmatprep.subr.mxu0 0.0
    %215 = vmatpush1.msra.mxu0 0.0
    %216 = vmatprep.subr.mxu0 0.0
    %217 = vmatpush1.msra.mxu0 0.0
    %218 = vmatprep.subr.mxu0 0.0
    %219 = vmatpush1.msra.mxu0 0.0
    %220 = vmatprep.subr.mxu0 0.0
    %221 = vmatpush1.msra.mxu0 0.0
    %222 = vmatprep.mubr.f32.mxu0 0.0
    %223 = vmatmul.mubr.f32.gmra.mrb[0].mxu0 %v133
    %v224 = vpop.f32.mrb[0].mxu0
    %v225 = vadd.f32 %v156, %v224
    %v226 = vpop.f32.mrb[0].mxu0
    %227 = vmatprep.mubr.f32.mxu0 0.0
    %228 = vmatmul.mubr.f32.gmra.mrb[0].mxu0 %v134
    %v229 = vpop.f32.mrb[0].mxu0
    %v230 = vadd.f32 %v156, %v229
    %v231 = vpop.f32.mrb[0].mxu0
    %232 = vdwg.mxu0
    %v233 = vmax.f32 %v225, 0.0
    %v234 = vmax.f32 %v230, 0.0
    %v235 = vld [vmem:[%s5] sm:$0xff]
    %v236 = vld [vmem:[%s5 + $0x8] sm:$0xff]
    %v237 = vld [vmem:[%s5 + $0x10] sm:$0xff]
    %v238 = vld [vmem:[%s5 + $0x18] sm:$0xff]
    %v239 = vld [vmem:[%s5 + $0x20] sm:$0xff]
    %v240 = vld [vmem:[%s5 + $0x28] sm:$0xff]
    %v241 = vld [vmem:[%s5 + $0x30] sm:$0xff]
    %v242 = vld [vmem:[%s5 + $0x38] sm:$0xff]
    %v243 = vld [vmem:[%s5 + $0x40] sm:$0xff]
    %v244 = vld [vmem:[%s5 + $0x48] sm:$0xff]
    %v245 = vld [vmem:[%s5 + $0x50] sm:$0xff]
    %v246 = vld [vmem:[%s5 + $0x58] sm:$0xff]
    %v247 = vld [vmem:[%s5 + $0x60] sm:$0xff]
    %v248 = vld [vmem:[%s5 + $0x68] sm:$0xff]
    %v249 = vld [vmem:[%s5 + $0x70] sm:$0xff]
    %v250 = vld [vmem:[%s5 + $0x78] sm:$0xff]
    %v251 = vld [vmem:[%s6] sm:$0x1]
    %v253 = vlaneseq
    %v254 = vshrl.u32 %v253, 7
    %v255 = vsub.s32 0, %v254
    %v256 = vrot.slane %v251, %v255
    %258 = vmatprep.subr.mxu0 0.0
    %259 = vmatpush1.msra.mxu0 %v235
    %260 = vmatprep.subr.mxu0 0.0
    %261 = vmatpush1.msra.mxu0 %v236
    %262 = vmatprep.subr.mxu0 0.0
    %263 = vmatpush1.msra.mxu0 %v237
    %264 = vmatprep.subr.mxu0 0.0
    %265 = vmatpush1.msra.mxu0 %v238
    %266 = vmatprep.subr.mxu0 0.0
    %267 = vmatpush1.msra.mxu0 %v239
    %268 = vmatprep.subr.mxu0 0.0
    %269 = vmatpush1.msra.mxu0 %v240
    %270 = vmatprep.subr.mxu0 0.0
    %271 = vmatpush1.msra.mxu0 %v241
    %272 = vmatprep.subr.mxu0 0.0
    %273 = vmatpush1.msra.mxu0 %v242
    %274 = vmatprep.subr.mxu0 0.0
    %275 = vmatpush1.msra.mxu0 %v243
    %276 = vmatprep.subr.mxu0 0.0
    %277 = vmatpush1.msra.mxu0 %v244
    %278 = vmatprep.subr.mxu0 0.0
    %279 = vmatpush1.msra.mxu0 %v245
    %280 = vmatprep.subr.mxu0 0.0
    %281 = vmatpush1.msra.mxu0 %v246
    %282 = vmatprep.subr.mxu0 0.0
    %283 = vmatpush1.msra.mxu0 %v247
    %284 = vmatprep.subr.mxu0 0.0
    %285 = vmatpush1.msra.mxu0 %v248
    %286 = vmatprep.subr.mxu0 0.0
    %287 = vmatpush1.msra.mxu0 %v249
    %288 = vmatprep.subr.mxu0 0.0
    %289 = vmatpush1.msra.mxu0 %v250
    %290 = vmatprep.subr.mxu0 0.0
    %291 = vmatpush1.msra.mxu0 0.0
    %292 = vmatprep.subr.mxu0 0.0
    %293 = vmatpush1.msra.mxu0 0.0
    %294 = vmatprep.subr.mxu0 0.0
    %295 = vmatpush1.msra.mxu0 0.0
    %296 = vmatprep.subr.mxu0 0.0
    %297 = vmatpush1.msra.mxu0 0.0
    %298 = vmatprep.subr.mxu0 0.0
    %299 = vmatpush1.msra.mxu0 0.0
    %300 = vmatprep.subr.mxu0 0.0
    %301 = vmatpush1.msra.mxu0 0.0
    %302 = vmatprep.subr.mxu0 0.0
    %303 = vmatpush1.msra.mxu0 0.0
    %304 = vmatprep.subr.mxu0 0.0
    %305 = vmatpush1.msra.mxu0 0.0
    %306 = vmatprep.subr.mxu0 0.0
    %307 = vmatpush1.msra.mxu0 0.0
    %308 = vmatprep.subr.mxu0 0.0
    %309 = vmatpush1.msra.mxu0 0.0
    %310 = vmatprep.subr.mxu0 0.0
    %311 = vmatpush1.msra.mxu0 0.0
    %312 = vmatprep.subr.mxu0 0.0
    %313 = vmatpush1.msra.mxu0 0.0
    %314 = vmatprep.subr.mxu0 0.0
    %315 = vmatpush1.msra.mxu0 0.0
    %316 = vmatprep.subr.mxu0 0.0
    %317 = vmatpush1.msra.mxu0 0.0
    %318 = vmatprep.subr.mxu0 0.0
    %319 = vmatpush1.msra.mxu0 0.0
    %320 = vmatprep.subr.mxu0 0.0
    %321 = vmatpush1.msra.mxu0 0.0
    %322 = vmatprep.mubr.f32.mxu0 0.0
    %323 = vmatmul.mubr.f32.gmra.mrb[0].mxu0 %v233
    %v324 = vpop.f32.mrb[0].mxu0
    %v325 = vadd.f32 %v256, %v324
    %v326 = vpop.f32.mrb[0].mxu0
    %327 = vmatprep.mubr.f32.mxu0 0.0
    %328 = vmatmul.mubr.f32.gmra.mrb[0].mxu0 %v234
    %v329 = vpop.f32.mrb[0].mxu0
    %v330 = vadd.f32 %v256, %v329
    %v331 = vpop.f32.mrb[0].mxu0
    %332 = vdwg.mxu0
    %v333 = vmax.f32 %v325, 0.0
    %v334 = vmax.f32 %v330, 0.0
    %v335 = vld [vmem:[%s7] sm:$0xff]
    %v336 = vld [vmem:[%s7 + $0x8] sm:$0xff]
    %v337 = vld [vmem:[%s7 + $0x10] sm:$0xff]
    %v338 = vld [vmem:[%s7 + $0x18] sm:$0xff]
    %v339 = vld [vmem:[%s7 + $0x20] sm:$0xff]
    %v340 = vld [vmem:[%s7 + $0x28] sm:$0xff]
    %v341 = vld [vmem:[%s7 + $0x30] sm:$0xff]
    %v342 = vld [vmem:[%s7 + $0x38] sm:$0xff]
    %v343 = vld [vmem:[%s7 + $0x40] sm:$0xff]
    %v344 = vld [vmem:[%s7 + $0x48] sm:$0xff]
    %v345 = vld [vmem:[%s7 + $0x50] sm:$0xff]
    %v346 = vld [vmem:[%s7 + $0x58] sm:$0xff]
    %v347 = vld [vmem:[%s7 + $0x60] sm:$0xff]
    %v348 = vld [vmem:[%s7 + $0x68] sm:$0xff]
    %v349 = vld [vmem:[%s7 + $0x70] sm:$0xff]
    %v350 = vld [vmem:[%s7 + $0x78] sm:$0xff]
    %v351 = vld [vmem:[%s8] sm:$0x1]
    %v353 = vlaneseq
    %v354 = vshrl.u32 %v353, 7
    %v355 = vsub.s32 0, %v354
    %v356 = vrot.slane %v351, %v355
    %358 = vmatprep.subr.mxu0 0.0
    %359 = vmatpush1.msra.mxu0 %v335
    %360 = vmatprep.subr.mxu0 0.0
    %361 = vmatpush1.msra.mxu0 %v336
    %362 = vmatprep.subr.mxu0 0.0
    %363 = vmatpush1.msra.mxu0 %v337
    %364 = vmatprep.subr.mxu0 0.0
    %365 = vmatpush1.msra.mxu0 %v338
    %366 = vmatprep.subr.mxu0 0.0
    %367 = vmatpush1.msra.mxu0 %v339
    %368 = vmatprep.subr.mxu0 0.0
    %369 = vmatpush1.msra.mxu0 %v340
    %370 = vmatprep.subr.mxu0 0.0
    %371 = vmatpush1.msra.mxu0 %v341
    %372 = vmatprep.subr.mxu0 0.0
    %373 = vmatpush1.msra.mxu0 %v342
    %374 = vmatprep.subr.mxu0 0.0
    %375 = vmatpush1.msra.mxu0 %v343
    %376 = vmatprep.subr.mxu0 0.0
    %377 = vmatpush1.msra.mxu0 %v344
    %378 = vmatprep.subr.mxu0 0.0
    %379 = vmatpush1.msra.mxu0 %v345
    %380 = vmatprep.subr.mxu0 0.0
    %381 = vmatpush1.msra.mxu0 %v346
    %382 = vmatprep.subr.mxu0 0.0
    %383 = vmatpush1.msra.mxu0 %v347
    %384 = vmatprep.subr.mxu0 0.0
    %385 = vmatpush1.msra.mxu0 %v348
    %386 = vmatprep.subr.mxu0 0.0
    %387 = vmatpush1.msra.mxu0 %v349
    %388 = vmatprep.subr.mxu0 0.0
    %389 = vmatpush1.msra.mxu0 %v350
    %390 = vmatprep.subr.mxu0 0.0
    %391 = vmatpush1.msra.mxu0 0.0
    %392 = vmatprep.subr.mxu0 0.0
    %393 = vmatpush1.msra.mxu0 0.0
    %394 = vmatprep.subr.mxu0 0.0
    %395 = vmatpush1.msra.mxu0 0.0
    %396 = vmatprep.subr.mxu0 0.0
    %397 = vmatpush1.msra.mxu0 0.0
    %398 = vmatprep.subr.mxu0 0.0
    %399 = vmatpush1.msra.mxu0 0.0
    %400 = vmatprep.subr.mxu0 0.0
    %401 = vmatpush1.msra.mxu0 0.0
    %402 = vmatprep.subr.mxu0 0.0
    %403 = vmatpush1.msra.mxu0 0.0
    %404 = vmatprep.subr.mxu0 0.0
    %405 = vmatpush1.msra.mxu0 0.0
    %406 = vmatprep.subr.mxu0 0.0
    %407 = vmatpush1.msra.mxu0 0.0
    %408 = vmatprep.subr.mxu0 0.0
    %409 = vmatpush1.msra.mxu0 0.0
    %410 = vmatprep.subr.mxu0 0.0
    %411 = vmatpush1.msra.mxu0 0.0
    %412 = vmatprep.subr.mxu0 0.0
    %413 = vmatpush1.msra.mxu0 0.0
    %414 = vmatprep.subr.mxu0 0.0
    %415 = vmatpush1.msra.mxu0 0.0
    %416 = vmatprep.subr.mxu0 0.0
    %417 = vmatpush1.msra.mxu0 0.0
    %418 = vmatprep.subr.mxu0 0.0
    %419 = vmatpush1.msra.mxu0 0.0
    %420 = vmatprep.subr.mxu0 0.0
    %421 = vmatpush1.msra.mxu0 0.0
    %422 = vmatprep.mubr.f32.mxu0 0.0
    %423 = vmatmul.mubr.f32.gmra.mrb[0].mxu0 %v333
    %v424 = vpop.f32.mrb[0].mxu0
    %v425 = vadd.f32 %v356, %v424
    %v426 = vpop.f32.mrb[0].mxu0
    %427 = vmatprep.mubr.f32.mxu0 0.0
    %428 = vmatmul.mubr.f32.gmra.mrb[0].mxu0 %v334
    %v429 = vpop.f32.mrb[0].mxu0
    %v430 = vadd.f32 %v356, %v429
    %v431 = vpop.f32.mrb[0].mxu0
    %432 = vdwg.mxu0
    %433 = vst [vmem:[#allocation2] sm:$0xff] %v425
    %434 = vst [vmem:[#allocation2 + $0x8] sm:$0xff] %v430
    // Predicated region
    $region38: #{predictor_forward.1} parent=1 // pred_check
      _
    $region39: #{predictor_forward.1} parent=1 // pred_check_branch
      %436 = sbr.rel (0) target = $region41
    $region40: #{predictor_forward.1} parent=1 // pred_region
      %s438 = ssub.s32 256, 256
      %439 = vsyncadd [#allocation3], %s438
      %s440 = sshll.u32 [#allocation2], 4
      %s441 = int_to_ptr.vmem [resolvable:$true] %s440
      %446 = dma.vmem_to_hbm [thread:$0]  %s441, 256, %s9, [#allocation3], 128, 128, 8
    $region41: #{predictor_forward.1} parent=1 // pred_fallthru
      _
    // Predicated region
    $region42: #{predictor_forward.1} parent=1 // pred_check
      _
    $region43: #{predictor_forward.1} parent=1 // pred_check_branch
      %448 = sbr.rel (0) target = $region45
    $region44: #{predictor_forward.1} parent=1 // pred_region
      %449 = dma.done [#allocation3], 256
    $region45: #{predictor_forward.1} parent=1 // pred_fallthru
      _
    %450 = vsyncpa [#allocation3], 1

</llo_original>
